<compile_context>
chip_gen: v7x
topology: tpu7x:2x2x1
jax: 0.10.0
libtpu: 0.0.40
codegen_flags: <defaults>
</compile_context>

<pallas_src>
import jax
import jax.numpy as jnp
from jax import lax
from jax.experimental import pallas as pl
from jax.experimental.pallas import tpu as pltpu

_LANES = 128
_SUBLANES = 8
_CHUNK_ROWS = 512  # rows per in-kernel sub-chunk (bounds temporary live range)


def _hw_config():
    """(bytes per input block, scoped vmem limit) tuned per TPU generation."""
    vmem = None
    try:
        vmem = pltpu.get_tpu_info().vmem_capacity_bytes
    except Exception:
        vmem = None
    if vmem is not None and vmem <= (64 << 20):
        # v7x-class: ~3.2 TB/s HBM but only 64 MiB VMEM -> 8 MiB blocks to
        # amortize the ~0.35us/step overhead; 2 inputs x 2 bufs x 8 = 32 MiB.
        return 8 << 20, 48 << 20
    # v5e / v6e-class (128 MiB VMEM): 4 MiB blocks (2 x 2 x 4 = 16 MiB buffers)
    # with an explicit 32 MiB scoped limit (v5e's default is only 16 MiB).
    return 4 << 20, 32 << 20


def _make_kernel(rows, tm, chunk, need_mask):
    """Kernel accumulating vreg-shaped partial sums of d^2 and |d|."""
    n_chunks = tm // chunk

    def kernel(p_ref, t_ref, sse_ref, sae_ref):
        step = pl.program_id(0)

        @pl.when(step == 0)
        def _init():
            sse_ref[...] = jnp.zeros_like(sse_ref)
            sae_ref[...] = jnp.zeros_like(sae_ref)

        # Rows of this block that are inside the real array (only matters for
        # the ragged last block when need_mask is True).
        valid_rows = rows - step * tm

        def body(c, carry):
            sse, sae = carry
            r0 = pl.multiple_of(c * chunk, chunk)
            p = p_ref[pl.ds(r0, chunk), :].astype(jnp.float32)
            t = t_ref[pl.ds(r0, chunk), :].astype(jnp.float32)
            d = p - t
            if need_mask:
                # Edge blocks contain unspecified data past the array extent:
                # mask it before BOTH accumulations (garbage could be NaN/Inf).
                rid = r0 + lax.broadcasted_iota(jnp.int32, (chunk, _LANES), 0)
                d = jnp.where(rid < valid_rows, d, 0.0)
            ad = jnp.abs(d)  # d dies here; ad feeds both sums
            sse = sse + (ad * ad).reshape(-1, _SUBLANES, _LANES).sum(axis=0)
            sae = sae + ad.reshape(-1, _SUBLANES, _LANES).sum(axis=0)
            return sse, sae

        zero = jnp.zeros((_SUBLANES, _LANES), jnp.float32)
        sse_b, sae_b = lax.fori_loop(0, n_chunks, body, (zero, zero),
                                     unroll=True)
        sse_ref[...] += sse_b
        sae_ref[...] += sae_b

    return kernel


def joint_loss(pred, target, first_weight=0.5):
    """JointLoss(MSE, L1, first_weight) forward pass via Pallas."""
    if first_weight < 0 or first_weight > 1.0:
        raise ValueError('firstweight value should be in [0,1]')
    second_weight = 1.0 - first_weight

    n_elems = pred.size
    itemsize = jnp.dtype(pred.dtype).itemsize
    block_bytes, vmem_limit = _hw_config()

    # Flatten to (rows, 128) lane-dense layout.  Pad only when the element
    # count is not already a multiple of 1024 (<= 1023 zeros, keeps rows a
    # multiple of 8); whole-tile padding is replaced by in-kernel masking.
    padded_n = ((n_elems + 1023) // 1024) * 1024
    flat_p = pred.reshape(-1)
    flat_t = target.reshape(-1)
    if padded_n != n_elems:
        # TODO(synk): a manual-DMA 1-D path could avoid this copy for
        # non-1024-aligned sizes; zero padding contributes 0 to both sums.
        flat_p = jnp.pad(flat_p, (0, padded_n - n_elems))
        flat_t = jnp.pad(flat_t, (0, padded_n - n_elems))
    rows = padded_n // _LANES
    pred2d = flat_p.reshape(rows, _LANES)
    targ2d = flat_t.reshape(rows, _LANES)

    # Row tile: ~block_bytes per input block; small inputs get a single block.
    big_tm = max(_CHUNK_ROWS, block_bytes // (_LANES * itemsize))
    if rows <= big_tm:
        tm = rows
    else:
        tm = big_tm
    chunk = _CHUNK_ROWS if (tm % _CHUNK_ROWS == 0) else tm
    steps = pl.cdiv(rows, tm)
    need_mask = (rows % tm) != 0

    in_spec = pl.BlockSpec((tm, _LANES), lambda i: (i, 0))
    out_spec = pl.BlockSpec((_SUBLANES, _LANES), lambda i: (0, 0))

    cost = pl.CostEstimate(
        flops=5 * n_elems,
        transcendentals=0,
        bytes_accessed=2 * n_elems * itemsize + 2 * _SUBLANES * _LANES * 4,
    )

    kernel = _make_kernel(rows, tm, chunk, need_mask)

    sse_part, sae_part = pl.pallas_call(
        kernel,
        out_shape=(
            jax.ShapeDtypeStruct((_SUBLANES, _LANES), jnp.float32),
            jax.ShapeDtypeStruct((_SUBLANES, _LANES), jnp.float32),
        ),
        grid_spec=pltpu.PrefetchScalarGridSpec(
            num_scalar_prefetch=0,
            grid=(steps,),
            in_specs=[in_spec, in_spec],
            out_specs=[out_spec, out_spec],
        ),
        compiler_params=pltpu.CompilerParams(
            dimension_semantics=("arbitrary",),
            vmem_limit_bytes=vmem_limit,
        ),
        cost_estimate=cost,
    )(pred2d, targ2d)

    # Final cross-lane reduce + weighted combine (tiny, done once).
    inv_n = jnp.float32(1.0 / n_elems)
    mse = jnp.sum(sse_part) * inv_n
    mae = jnp.sum(sae_part) * inv_n
    return jnp.float32(first_weight) * mse + jnp.float32(second_weight) * mae


if __name__ == "__main__":
    key = jax.random.PRNGKey(0)
    kp, kt = jax.random.split(key)
    # NCHW inputs, small shapes: batch=2, channels=4, spatial=16x16
    pred = jax.random.normal(kp, (2, 4, 16, 16), dtype=jnp.float32)
    target = jax.random.normal(kt, (2, 4, 16, 16), dtype=jnp.float32)

    loss = joint_loss(pred, target, first_weight=0.5)
    loss = jax.block_until_ready(loss)

    # pure-JAX reference check
    d = pred - target
    ref = 0.5 * jnp.mean(d * d) + 0.5 * jnp.mean(jnp.abs(d))
    assert jnp.allclose(loss, ref, rtol=1e-5, atol=1e-5), (loss, ref)

    print("KERNEL_OK")
</pallas_src>

<mosaic_0001>
module attributes {stable_mosaic.version = 11 : i64} {
  func.func @kernel(%arg0: i32, %arg1: memref<16x128xf32, #tpu.memory_space<vmem>>, %arg2: memref<16x128xf32, #tpu.memory_space<vmem>>, %arg3: memref<8x128xf32, #tpu.memory_space<vmem>>, %arg4: memref<8x128xf32, #tpu.memory_space<vmem>>) attributes {dimension_semantics = [#tpu.dimension_semantics<arbitrary>], iteration_bounds = array<i64: 1>, scalar_prefetch = 0 : i64, scratch_operands = 0 : i64, tpu.core_type = #tpu.core_type<tc>, window_params = [{transform_indices = @transform_0, window_bounds = array<i64: 16, 128>}, {transform_indices = @transform_1, window_bounds = array<i64: 16, 128>}, {pipeline_mode = #tpu.pipeline_mode<synchronous>, transform_indices = @transform_2, window_bounds = array<i64: 8, 128>}, {pipeline_mode = #tpu.pipeline_mode<synchronous>, transform_indices = @transform_3, window_bounds = array<i64: 8, 128>}]} {
    %c0_i32 = arith.constant 0 : i32
    %0 = arith.cmpi eq, %arg0, %c0_i32 : i32
    %1 = arith.extui %0 : i1 to i32
    %c0_i32_0 = arith.constant 0 : i32
    %2 = arith.cmpi ne, %1, %c0_i32_0 : i32
    scf.if %2 {
      %cst_13 = arith.constant 0.000000e+00 : f32
      %25 = vector.broadcast %cst_13 : f32 to vector<8x128xf32>
      %c0_14 = arith.constant 0 : index
      %c0_15 = arith.constant 0 : index
      %26 = vector.load %arg3[%c0_14, %c0_15] : memref<8x128xf32, #tpu.memory_space<vmem>>, vector<8x128xf32>
      tpu.vector_store %arg3[%c0_14, %c0_15], %25 {strides = array<i32>} : memref<8x128xf32, #tpu.memory_space<vmem>>, vector<8x128xf32>,
      %cst_16 = arith.constant 0.000000e+00 : f32
      %27 = vector.broadcast %cst_16 : f32 to vector<8x128xf32>
      %c0_17 = arith.constant 0 : index
      %c0_18 = arith.constant 0 : index
      %28 = vector.load %arg4[%c0_17, %c0_18] : memref<8x128xf32, #tpu.memory_space<vmem>>, vector<8x128xf32>
      tpu.vector_store %arg4[%c0_17, %c0_18], %27 {strides = array<i32>} : memref<8x128xf32, #tpu.memory_space<vmem>>, vector<8x128xf32>,
    } else {
    }
    %cst = arith.constant 0.000000e+00 : f32
    %3 = vector.broadcast %cst : f32 to vector<8x128xf32>
    %c0_i32_1 = arith.constant 0 : i32
    %c16_i32 = arith.constant 16 : i32
    %4 = arith.muli %c0_i32_1, %c16_i32 : i32
    %5 = tpu.assume_multiple %4, 16 : i32
    %6 = arith.index_cast %5 : i32 to index
    %c0 = arith.constant 0 : index
    %7 = vector.load %arg1[%6, %c0] : memref<16x128xf32, #tpu.memory_space<vmem>>, vector<16x128xf32>
    %8 = arith.index_cast %5 : i32 to index
    %c0_2 = arith.constant 0 : index
    %9 = vector.load %arg2[%8, %c0_2] : memref<16x128xf32, #tpu.memory_space<vmem>>, vector<16x128xf32>
    %10 = arith.subf %7, %9 : vector<16x128xf32>
    %11 = math.absf %10 : vector<16x128xf32>
    %12 = arith.mulf %11, %11 : vector<16x128xf32>
    %13 = vector.shape_cast %12 : vector<16x128xf32> to vector<2x8x128xf32>
    %cst_3 = arith.constant dense<0.000000e+00> : vector<8x128xf32>
    %14 = vector.multi_reduction <add>, %13, %cst_3 [0] : vector<2x8x128xf32> to vector<8x128xf32>
    %15 = arith.addf %3, %14 : vector<8x128xf32>
    %16 = vector.shape_cast %11 : vector<16x128xf32> to vector<2x8x128xf32>
    %cst_4 = arith.constant dense<0.000000e+00> : vector<8x128xf32>
    %17 = vector.multi_reduction <add>, %16, %cst_4 [0] : vector<2x8x128xf32> to vector<8x128xf32>
    %18 = arith.addf %3, %17 : vector<8x128xf32>
    %c1_i32 = arith.constant 1 : i32
    %c0_5 = arith.constant 0 : index
    %c0_6 = arith.constant 0 : index
    %19 = vector.load %arg3[%c0_5, %c0_6] : memref<8x128xf32, #tpu.memory_space<vmem>>, vector<8x128xf32>
    %20 = arith.addf %19, %15 : vector<8x128xf32>
    %c0_7 = arith.constant 0 : index
    %c0_8 = arith.constant 0 : index
    %21 = vector.load %arg3[%c0_7, %c0_8] : memref<8x128xf32, #tpu.memory_space<vmem>>, vector<8x128xf32>
    tpu.vector_store %arg3[%c0_7, %c0_8], %20 {strides = array<i32>} : memref<8x128xf32, #tpu.memory_space<vmem>>, vector<8x128xf32>,
    %c0_9 = arith.constant 0 : index
    %c0_10 = arith.constant 0 : index
    %22 = vector.load %arg4[%c0_9, %c0_10] : memref<8x128xf32, #tpu.memory_space<vmem>>, vector<8x128xf32>
    %23 = arith.addf %22, %18 : vector<8x128xf32>
    %c0_11 = arith.constant 0 : index
    %c0_12 = arith.constant 0 : index
    %24 = vector.load %arg4[%c0_11, %c0_12] : memref<8x128xf32, #tpu.memory_space<vmem>>, vector<8x128xf32>
    tpu.vector_store %arg4[%c0_11, %c0_12], %23 {strides = array<i32>} : memref<8x128xf32, #tpu.memory_space<vmem>>, vector<8x128xf32>,
    return
  }
  func.func @transform_0(%arg0: i32) -> (i32, i32) {
    %c0_i32 = arith.constant 0 : i32
    %c0_i32_0 = arith.constant 0 : i32
    return %arg0, %c0_i32 : i32, i32
  }
  func.func @transform_1(%arg0: i32) -> (i32, i32) {
    %c0_i32 = arith.constant 0 : i32
    %c0_i32_0 = arith.constant 0 : i32
    return %arg0, %c0_i32 : i32, i32
  }
  func.func @transform_2(%arg0: i32) -> (i32, i32) {
    %c0_i32 = arith.constant 0 : i32
    %c0_i32_0 = arith.constant 0 : i32
    %c0_i32_1 = arith.constant 0 : i32
    return %c0_i32, %c0_i32_0 : i32, i32
  }
  func.func @transform_3(%arg0: i32) -> (i32, i32) {
    %c0_i32 = arith.constant 0 : i32
    %c0_i32_0 = arith.constant 0 : i32
    %c0_i32_1 = arith.constant 0 : i32
    return %c0_i32, %c0_i32_0 : i32, i32
  }
}

</mosaic_0001>

<llo_original>
// kernel: tpu_custom_call.1
$region0: #{tpu_custom_call.1}
  #allocation0 [shape = 'u32[]', space=smem, size = 0x4, offset = 0x4, fixed_abs, tag = 'smem constant byte address 0x4 - core index']
  #allocation1 [shape = 'u32[144,128]{1,0:T(1,128)}', space=vmem, size = 0x12000, scoped, tag = 'internal scratch']
  %s0 = inlined_call_operand.hbm [shape: f32[16,128], index: 0, kind: input, shape index: {}]
  %s1 = inlined_call_operand.hbm [shape: f32[16,128], index: 1, kind: input, shape index: {}]
  %s2 = inlined_call_operand.hbm [shape: f32[8,128], index: 2, kind: output, shape index: {0}]
  %s3 = inlined_call_operand.hbm [shape: f32[8,128], index: 3, kind: output, shape index: {1}]
  %4 = xla_tuple %s2, %s3
  %s5 = sld [smem:[#allocation0]]
  $region38: #{tpu_custom_call.1} parent=0
    _
  %s7 = ssub.s32 1, %s5
  %s8 = scalar_select 0, %s7, %s5
  $region1: #{tpu_custom_call.1} parent=0
    #allocation2 [shape = 'u8[8192]{0}', space=vmem, size = 0x2000, scoped, tag = 'input window, operand 0, single buffered']
    #allocation3 [shape = 's32[1]{0}', space=sflag, size = 0x4, scoped, tag = 'scoped memory for tpu_custom_call.1']
    #allocation4 [shape = 's32[1]{0}', space=sflag, size = 0x4, scoped, tag = 'scoped memory for tpu_custom_call.1']
    #allocation5 [shape = 'u8[8192]{0}', space=vmem, size = 0x2000, scoped, tag = 'input window, operand 1, single buffered']
    #allocation6 [shape = 's32[1]{0}', space=sflag, size = 0x4, scoped, tag = 'scoped memory for tpu_custom_call.1']
    #allocation7 [shape = 'u8[4096]{0}', space=vmem, size = 0x1000, scoped, tag = 'output window, operand 0, single buffered']
    #allocation8 [shape = 'u8[4096]{0}', space=vmem, size = 0x1000, scoped, tag = 'output window, operand 1, single buffered']
    #allocation9 [shape = 's32[1]{0}', space=sflag, size = 0x4, scoped, tag = 'scoped memory for tpu_custom_call.1']
    %9 = vsyncpa [#allocation3], 0
    %10 = vsyncpa [#allocation6], 0
    %11 = vsyncpa [#allocation4], 0
    %12 = vsyncpa [#allocation9], 0
    // Predicated region
    $region2: #{tpu_custom_call.1} parent=1 // pred_check
      _
    $region3: #{tpu_custom_call.1} parent=1 // pred_check_branch
      %14 = sbr.rel (0) target = $region5
    $region4: #{tpu_custom_call.1} parent=1 // pred_region
      %s16 = ssub.s32 256, 256
      %17 = vsyncadd [#allocation3], %s16
      %s18 = sshll.u32 [#allocation2], 4
      %s19 = int_to_ptr.vmem [resolvable:$true] %s18
      %24 = dma.hbm_to_vmem [thread:$0]  %s0, 256, %s19, [#allocation3], 128, 128, 8
    $region5: #{tpu_custom_call.1} parent=1 // pred_fallthru
      _
    // Predicated region
    $region6: #{tpu_custom_call.1} parent=1 // pred_check
      _
    $region7: #{tpu_custom_call.1} parent=1 // pred_check_branch
      %26 = sbr.rel (0) target = $region9
    $region8: #{tpu_custom_call.1} parent=1 // pred_region
      %s28 = ssub.s32 256, 256
      %29 = vsyncadd [#allocation6], %s28
      %s30 = sshll.u32 [#allocation5], 4
      %s31 = int_to_ptr.vmem [resolvable:$true] %s30
      %36 = dma.hbm_to_vmem [thread:$0]  %s1, 256, %s31, [#allocation6], 128, 128, 8
    $region9: #{tpu_custom_call.1} parent=1 // pred_fallthru
      _
    // Predicated region
    $region10: #{tpu_custom_call.1} parent=1 // pred_check
      _
    $region11: #{tpu_custom_call.1} parent=1 // pred_check_branch
      %38 = sbr.rel (0) target = $region13
    $region12: #{tpu_custom_call.1} parent=1 // pred_region
      %39 = dma.done [#allocation3], 256
    $region13: #{tpu_custom_call.1} parent=1 // pred_fallthru
      _
    // Predicated region
    $region14: #{tpu_custom_call.1} parent=1 // pred_check
      _
    $region15: #{tpu_custom_call.1} parent=1 // pred_check_branch
      %41 = sbr.rel (0) target = $region17
    $region16: #{tpu_custom_call.1} parent=1 // pred_region
      %42 = dma.done [#allocation6], 256
    $region17: #{tpu_custom_call.1} parent=1 // pred_fallthru
      _
    %p43 = scmp.eq.s32.totalorder 0, 0
    // Predicated region
    $region18: #{tpu_custom_call.1} parent=1 // pred_check
      %p44 = pneg %p43
    $region19: #{tpu_custom_call.1} parent=1 // pred_check_branch
      %46 = sbr.rel (%p44) target = $region21
    $region20: #{tpu_custom_call.1} parent=1 // pred_region
      %47 = vst [vmem:[#allocation7] sm:$0xff] 0.0
      %48 = vst [vmem:[#allocation8] sm:$0xff] 0.0
    $region21: #{tpu_custom_call.1} parent=1 // pred_fallthru
      _
    %v49 = vld [vmem:[#allocation2] sm:$0xff]
    %v50 = vld [vmem:[#allocation2 + $0x8] sm:$0xff]
    %v51 = vld [vmem:[#allocation5] sm:$0xff]
    %v52 = vld [vmem:[#allocation5 + $0x8] sm:$0xff]
    %v53 = vsub.f32 %v49, %v51
    %v54 = vsub.f32 %v50, %v52
    %v55 = vand.u32 2147483647, %v53
    %v56 = vand.u32 2147483647, %v54
    %v57 = vmul.f32 %v55, %v55
    %v58 = vmul.f32 %v56, %v56
    %v59 = vadd.f32 %v57, %v58
    %v60 = vadd.f32 %v59, 0.0
    %v61 = vadd.f32 %v55, %v56
    %v62 = vadd.f32 %v61, 0.0
    %v63 = vld [vmem:[#allocation7] sm:$0xff]
    %v64 = vadd.f32 %v63, %v60
    %65 = vst [vmem:[#allocation7] sm:$0xff] %v64
    %v66 = vld [vmem:[#allocation8] sm:$0xff]
    %v67 = vadd.f32 %v66, %v62
    %68 = vst [vmem:[#allocation8] sm:$0xff] %v67
    // Predicated region
    $region22: #{tpu_custom_call.1} parent=1 // pred_check
      _
    $region23: #{tpu_custom_call.1} parent=1 // pred_check_branch
      %70 = sbr.rel (0) target = $region25
    $region24: #{tpu_custom_call.1} parent=1 // pred_region
      %s72 = ssub.s32 128, 128
      %73 = vsyncadd [#allocation4], %s72
      %s75 = sshll.u32 [#allocation7], 4
      %s76 = int_to_ptr.vmem [resolvable:$true] %s75
      %78 = dma.vmem_to_hbm [thread:$0]  %s76, 128, %s2, [#allocation4]
    $region25: #{tpu_custom_call.1} parent=1 // pred_fallthru
      _
    // Predicated region
    $region26: #{tpu_custom_call.1} parent=1 // pred_check
      _
    $region27: #{tpu_custom_call.1} parent=1 // pred_check_branch
      %80 = sbr.rel (0) target = $region29
    $region28: #{tpu_custom_call.1} parent=1 // pred_region
      %s82 = ssub.s32 128, 128
      %83 = vsyncadd [#allocation9], %s82
      %s85 = sshll.u32 [#allocation8], 4
      %s86 = int_to_ptr.vmem [resolvable:$true] %s85
      %88 = dma.vmem_to_hbm [thread:$0]  %s86, 128, %s3, [#allocation9]
    $region29: #{tpu_custom_call.1} parent=1 // pred_fallthru
      _
    // Predicated region
    $region30: #{tpu_custom_call.1} parent=1 // pred_check
      _
    $region31: #{tpu_custom_call.1} parent=1 // pred_check_branch
      %90 = sbr.rel (0) target = $region33
    $region32: #{tpu_custom_call.1} parent=1 // pred_region
      %91 = dma.done [#allocation4], 128
    $region33: #{tpu_custom_call.1} parent=1 // pred_fallthru
      _
    // Predicated region
    $region34: #{tpu_custom_call.1} parent=1 // pred_check
      _
    $region35: #{tpu_custom_call.1} parent=1 // pred_check_branch
      %93 = sbr.rel (0) target = $region37
    $region36: #{tpu_custom_call.1} parent=1 // pred_region
      %94 = dma.done [#allocation9], 128
    $region37: #{tpu_custom_call.1} parent=1 // pred_fallthru
      _
    %95 = vsyncpa [#allocation3], 1
    %96 = vsyncpa [#allocation6], 1
    %97 = vsyncpa [#allocation4], 1
    %98 = vsyncpa [#allocation9], 1

</llo_original>
